<compile_context>
chip_gen: v7x
topology: tpu7x:2x2x1
jax: 0.10.0
libtpu: 0.0.40
codegen_flags: <defaults>
</compile_context>

<pallas_src>
import functools

import jax
import jax.numpy as jnp
from jax.experimental import pallas as pl
from jax.experimental.pallas import tpu as pltpu


def _vae_kernel(sample_chunk, n_samples, latent_dim,
                x_ref, we_ref, wml_ref, wd1_ref, wd2_ref, eps_ref,
                out_ref, ml_sc, acc_sc):
    """Grid = (batch_tiles, sample_chunks); axis 1 is the accumulation axis."""
    k = pl.program_id(1)
    bm, d_in = acc_sc.shape
    L = latent_dim
    mxu_dtype = we_ref.dtype  # bf16 operands, f32 accumulation on the MXU

    # ---- encoder: once per batch tile; also zero the sample accumulator ----
    @pl.when(k == 0)
    def _():
        h = jnp.dot(x_ref[...], we_ref[...],
                    preferred_element_type=jnp.float32)
        h = jnp.maximum(h, 0.0)                                   # ReLU (f32)
        ml_sc[...] = jnp.dot(h.astype(mxu_dtype), wml_ref[...],
                             preferred_element_type=jnp.float32)  # (bm, 2L)
        acc_sc[...] = jnp.zeros_like(acc_sc)

    ml = ml_sc[...]
    mean = ml[:, :L]                                              # (bm, L)
    logvar = ml[:, L:]                                            # (bm, L)
    sd = jnp.exp(0.5 * logvar)                                    # f32 (EUP)

    # ---- this chunk of reparameterized samples, one batched matmul pair ----
    # eps block: (sample_chunk, bm, L); broadcast (no jnp.tile), f32 on VPU.
    z3 = eps_ref[...] * sd[None, :, :] + mean[None, :, :]
    z = z3.reshape(sample_chunk * bm, L).astype(mxu_dtype)

    d1 = jnp.dot(z, wd1_ref[...], preferred_element_type=jnp.float32)
    d1 = jnp.maximum(d1, 0.0)                                     # ReLU (f32)
    logits = jnp.dot(d1.astype(mxu_dtype), wd2_ref[...],
                     preferred_element_type=jnp.float32)
    s = jax.nn.sigmoid(logits)                                    # (c*bm, D_in) f32

    acc_sc[...] += jnp.sum(s.reshape(sample_chunk, bm, d_in), axis=0)

    # ---- finalize: single slab [x_out | mean | logvar], one full store -----
    @pl.when(k == pl.num_programs(1) - 1)
    def _():
        out_ref[...] = jnp.concatenate(
            [acc_sc[...] * (1.0 / n_samples), ml_sc[...]], axis=1)


def prepare_vae_params(w_e, w_mean, w_logvar, w_d1, w_d2,
                       *, mxu_dtype=jnp.bfloat16):
    """One-time transform of PyTorch-layout (out, in) weights:
    transpose to (in, out), fuse the mean/logvar heads, cast to MXU dtype.
    Hoisted out of the per-call path."""
    we_t = w_e.T.astype(mxu_dtype)                               # (D_in, H)
    wml_t = jnp.concatenate([w_mean.T, w_logvar.T], 1).astype(mxu_dtype)  # (H, 2L)
    wd1_t = w_d1.T.astype(mxu_dtype)                             # (L, H)
    wd2_t = w_d2.T.astype(mxu_dtype)                             # (H, D_in)
    return we_t, wml_t, wd1_t, wd2_t


def _pick_sample_chunk(n_samples, bm, hidden_dim, input_dim,
                       budget_bytes=4 << 20):
    """Largest divisor of n_samples whose per-chunk intermediates (f32 + bf16
    copies of z/d1/sigmoid, roughly 6 * c * bm * (H + D_in) bytes) fit a small
    VMEM budget, keeping peak VMEM independent of n_samples."""
    best = 1
    for c in range(1, n_samples + 1):
        if n_samples % c:
            continue
        if 6 * c * bm * (hidden_dim + input_dim) <= budget_bytes:
            best = c
    return best


def vae_forward(x, params, eps, *, n_samples, sample_chunk=None,
                batch_tile=None):
    """x: (B, D_in) float32. params: prepare_vae_params output.
    eps: (n_samples, B, L) float32 reparameterization noise."""
    we_t, wml_t, wd1_t, wd2_t = params
    B, d_in = x.shape
    H = we_t.shape[1]
    L = wml_t.shape[1] // 2
    assert eps.shape == (n_samples, B, L)

    bm = batch_tile if batch_tile is not None else min(B, 256)
    assert B % bm == 0, "batch must be divisible by the batch tile"
    if sample_chunk is None:
        sample_chunk = _pick_sample_chunk(n_samples, bm, H, d_in)
    assert n_samples % sample_chunk == 0
    n_chunks = n_samples // sample_chunk

    mxu_dtype = we_t.dtype
    x_in = x.astype(mxu_dtype)

    kernel = functools.partial(_vae_kernel, sample_chunk, n_samples, L)

    out = pl.pallas_call(
        kernel,
        out_shape=jax.ShapeDtypeStruct((B, d_in + 2 * L), jnp.float32),
        grid_spec=pltpu.PrefetchScalarGridSpec(
            num_scalar_prefetch=0,
            grid=(B // bm, n_chunks),
            in_specs=[
                pl.BlockSpec((bm, d_in), lambda i, k: (i, 0)),          # x
                pl.BlockSpec((d_in, H), lambda i, k: (0, 0)),           # we
                pl.BlockSpec((H, 2 * L), lambda i, k: (0, 0)),          # wml
                pl.BlockSpec((L, H), lambda i, k: (0, 0)),              # wd1
                pl.BlockSpec((H, d_in), lambda i, k: (0, 0)),           # wd2
                pl.BlockSpec((sample_chunk, bm, L), lambda i, k: (k, i, 0)),  # eps
            ],
            out_specs=pl.BlockSpec((bm, d_in + 2 * L), lambda i, k: (i, 0)),
            scratch_shapes=[
                pltpu.VMEM((bm, 2 * L), jnp.float32),   # [mean | logvar]
                pltpu.VMEM((bm, d_in), jnp.float32),    # sample-sum accumulator
            ],
        ),
        compiler_params=pltpu.CompilerParams(
            dimension_semantics=("parallel", "arbitrary")),
    )(x_in, we_t, wml_t, wd1_t, wd2_t, eps)

    x_out = out[:, :d_in]
    z_mean = out[:, d_in:d_in + L]
    z_logvar = out[:, d_in + L:]
    return x_out, z_mean, z_logvar


def _init_linear(key, out_features, in_features):
    # Deterministic synthetic init (roughly nn.Linear's uniform scale).
    bound = 1.0 / jnp.sqrt(jnp.float32(in_features))
    return jax.random.uniform(key, (out_features, in_features),
                              dtype=jnp.float32, minval=-bound, maxval=bound)


def _reference(x, params, eps, n_samples, latent_dim):
    """Pure-JAX reference using the same bf16-operand / f32-accumulate path."""
    we_t, wml_t, wd1_t, wd2_t = params
    dt = we_t.dtype
    h = jnp.maximum(jnp.dot(x.astype(dt), we_t,
                            preferred_element_type=jnp.float32), 0.0)
    ml = jnp.dot(h.astype(dt), wml_t, preferred_element_type=jnp.float32)
    mean, logvar = ml[:, :latent_dim], ml[:, latent_dim:]
    sd = jnp.exp(0.5 * logvar)
    acc = jnp.zeros((x.shape[0], wd2_t.shape[1]), jnp.float32)
    for i in range(n_samples):
        z = (eps[i] * sd + mean).astype(dt)
        d1 = jnp.maximum(jnp.dot(z, wd1_t,
                                 preferred_element_type=jnp.float32), 0.0)
        logits = jnp.dot(d1.astype(dt), wd2_t,
                         preferred_element_type=jnp.float32)
        acc = acc + jax.nn.sigmoid(logits)
    return acc / n_samples, mean, logvar


if __name__ == "__main__":
    # Small shapes consistent with the module.
    B = 8
    input_dim = 32
    hidden_dim = 64
    latent_dim = 8
    n_samples = 10

    key = jax.random.PRNGKey(0)
    kx, ke, km, kl, kd1, kd2, keps = jax.random.split(key, 7)

    x = jax.random.normal(kx, (B, input_dim), dtype=jnp.float32)

    w_e = _init_linear(ke, hidden_dim, input_dim)        # fc_e
    w_mean = _init_linear(km, latent_dim, hidden_dim)    # fc_mean
    w_logvar = _init_linear(kl, latent_dim, hidden_dim)  # fc_logvar
    w_d1 = _init_linear(kd1, hidden_dim, latent_dim)     # fc_d1
    w_d2 = _init_linear(kd2, input_dim, hidden_dim)      # fc_d2

    # torch.randn-equivalent reparameterization noise, drawn outside the kernel.
    eps = jax.random.normal(keps, (n_samples, B, latent_dim), dtype=jnp.float32)

    # One-time weight prep (transpose + head fusion + bf16 cast), hoisted
    # out of the per-call path.
    params = prepare_vae_params(w_e, w_mean, w_logvar, w_d1, w_d2)

    # sample_chunk=5 exercises the 2-chunk grid accumulator path at toy size.
    fwd = jax.jit(functools.partial(vae_forward, n_samples=n_samples,
                                    sample_chunk=5))
    x_out, z_mean, z_logvar = jax.block_until_ready(fwd(x, params, eps))

    xout_ref, mean_ref, logvar_ref = _reference(x, params, eps, n_samples,
                                                latent_dim)

    assert jnp.allclose(z_mean, mean_ref, atol=2e-3, rtol=2e-3)
    assert jnp.allclose(z_logvar, logvar_ref, atol=2e-3, rtol=2e-3)
    assert jnp.allclose(x_out, xout_ref, atol=2e-3, rtol=2e-3)

    print("KERNEL_OK")
</pallas_src>

<mosaic_0001>
module attributes {stable_mosaic.version = 11 : i64} {
  func.func @_vae_kernel(%arg0: i32, %arg1: i32, %arg2: memref<8x32xbf16, #tpu.memory_space<vmem>>, %arg3: memref<32x64xbf16, #tpu.memory_space<vmem>>, %arg4: memref<64x16xbf16, #tpu.memory_space<vmem>>, %arg5: memref<8x64xbf16, #tpu.memory_space<vmem>>, %arg6: memref<64x32xbf16, #tpu.memory_space<vmem>>, %arg7: memref<5x8x8xf32, #tpu.memory_space<vmem>>, %arg8: memref<8x48xf32, #tpu.memory_space<vmem>>, %arg9: memref<8x16xf32, #tpu.memory_space<vmem>>, %arg10: memref<8x32xf32, #tpu.memory_space<vmem>>) attributes {dimension_semantics = [#tpu.dimension_semantics<parallel>, #tpu.dimension_semantics<arbitrary>], iteration_bounds = array<i64: 1, 2>, scalar_prefetch = 0 : i64, scratch_operands = 2 : i64, tpu.core_type = #tpu.core_type<tc>, window_params = [{transform_indices = @transform_0, window_bounds = array<i64: 8, 32>}, {pipeline_mode = #tpu.pipeline_mode<synchronous>, transform_indices = @transform_1, window_bounds = array<i64: 32, 64>}, {pipeline_mode = #tpu.pipeline_mode<synchronous>, transform_indices = @transform_2, window_bounds = array<i64: 64, 16>}, {pipeline_mode = #tpu.pipeline_mode<synchronous>, transform_indices = @transform_3, window_bounds = array<i64: 8, 64>}, {pipeline_mode = #tpu.pipeline_mode<synchronous>, transform_indices = @transform_4, window_bounds = array<i64: 64, 32>}, {transform_indices = @transform_5, window_bounds = array<i64: 5, 8, 8>}, {transform_indices = @transform_6, window_bounds = array<i64: 8, 48>}]} {
    %c0_i32 = arith.constant 0 : i32
    %0 = arith.cmpi eq, %arg1, %c0_i32 : i32
    %1 = arith.extui %0 : i1 to i32
    %c0_i32_0 = arith.constant 0 : i32
    %2 = arith.cmpi ne, %1, %c0_i32_0 : i32
    scf.if %2 {
      %c0_19 = arith.constant 0 : index
      %c0_20 = arith.constant 0 : index
      %38 = vector.load %arg2[%c0_19, %c0_20] : memref<8x32xbf16, #tpu.memory_space<vmem>>, vector<8x32xbf16>
      %c0_21 = arith.constant 0 : index
      %c0_22 = arith.constant 0 : index
      %39 = vector.load %arg3[%c0_21, %c0_22] : memref<32x64xbf16, #tpu.memory_space<vmem>>, vector<32x64xbf16>
      %cst_23 = arith.constant dense<0.000000e+00> : vector<8x64xf32>
      %40 = tpu.matmul %38, %39, %cst_23 {dimension_numbers = #tpu.dot_dimension_numbers<[1], [0], [0], [1], [0, 0, 1, 1], [], []>} : vector<8x32xbf16>, vector<32x64xbf16>, vector<8x64xf32> -> vector<8x64xf32>
      %cst_24 = arith.constant 0.000000e+00 : f32
      %41 = vector.broadcast %cst_24 : f32 to vector<8x64xf32>
      %42 = arith.maximumf %40, %41 : vector<8x64xf32>
      %43 = arith.truncf %42 : vector<8x64xf32> to vector<8x64xbf16>
      %c0_25 = arith.constant 0 : index
      %c0_26 = arith.constant 0 : index
      %44 = vector.load %arg4[%c0_25, %c0_26] : memref<64x16xbf16, #tpu.memory_space<vmem>>, vector<64x16xbf16>
      %cst_27 = arith.constant dense<0.000000e+00> : vector<8x16xf32>
      %45 = tpu.matmul %43, %44, %cst_27 {dimension_numbers = #tpu.dot_dimension_numbers<[1], [0], [0], [1], [0, 0, 1, 1], [], []>} : vector<8x64xbf16>, vector<64x16xbf16>, vector<8x16xf32> -> vector<8x16xf32>
      %c0_28 = arith.constant 0 : index
      %c0_29 = arith.constant 0 : index
      %46 = vector.load %arg9[%c0_28, %c0_29] : memref<8x16xf32, #tpu.memory_space<vmem>>, vector<8x16xf32>
      tpu.vector_store %arg9[%c0_28, %c0_29], %45 {strides = array<i32>} : memref<8x16xf32, #tpu.memory_space<vmem>>, vector<8x16xf32>,
      %cst_30 = arith.constant 0.000000e+00 : f32
      %47 = vector.broadcast %cst_30 : f32 to vector<8x32xf32>
      %c0_31 = arith.constant 0 : index
      %c0_32 = arith.constant 0 : index
      %48 = vector.load %arg10[%c0_31, %c0_32] : memref<8x32xf32, #tpu.memory_space<vmem>>, vector<8x32xf32>
      tpu.vector_store %arg10[%c0_31, %c0_32], %47 {strides = array<i32>} : memref<8x32xf32, #tpu.memory_space<vmem>>, vector<8x32xf32>,
    } else {
    }
    %c0 = arith.constant 0 : index
    %c0_1 = arith.constant 0 : index
    %3 = vector.load %arg9[%c0, %c0_1] : memref<8x16xf32, #tpu.memory_space<vmem>>, vector<8x16xf32>
    %4 = vector.extract_strided_slice %3 {offsets = [0, 0], sizes = [8, 8], strides = [1, 1]} : vector<8x16xf32> to vector<8x8xf32>
    %5 = vector.extract_strided_slice %3 {offsets = [0, 8], sizes = [8, 8], strides = [1, 1]} : vector<8x16xf32> to vector<8x8xf32>
    %cst = arith.constant 5.000000e-01 : f32
    %6 = vector.broadcast %cst : f32 to vector<8x8xf32>
    %7 = arith.mulf %6, %5 : vector<8x8xf32>
    %8 = math.exp %7 : vector<8x8xf32>
    %c0_2 = arith.constant 0 : index
    %c0_3 = arith.constant 0 : index
    %c0_4 = arith.constant 0 : index
    %9 = vector.load %arg7[%c0_2, %c0_3, %c0_4] : memref<5x8x8xf32, #tpu.memory_space<vmem>>, vector<5x8x8xf32>
    %10 = vector.shape_cast %8 : vector<8x8xf32> to vector<1x8x8xf32>
    %11 = vector.broadcast %10 : vector<1x8x8xf32> to vector<5x8x8xf32>
    %12 = arith.mulf %9, %11 : vector<5x8x8xf32>
    %13 = vector.shape_cast %4 : vector<8x8xf32> to vector<1x8x8xf32>
    %14 = vector.broadcast %13 : vector<1x8x8xf32> to vector<5x8x8xf32>
    %15 = arith.addf %12, %14 : vector<5x8x8xf32>
    %16 = vector.shape_cast %15 : vector<5x8x8xf32> to vector<40x8xf32>
    %17 = arith.truncf %16 : vector<40x8xf32> to vector<40x8xbf16>
    %c0_5 = arith.constant 0 : index
    %c0_6 = arith.constant 0 : index
    %18 = vector.load %arg5[%c0_5, %c0_6] : memref<8x64xbf16, #tpu.memory_space<vmem>>, vector<8x64xbf16>
    %cst_7 = arith.constant dense<0.000000e+00> : vector<40x64xf32>
    %19 = tpu.matmul %17, %18, %cst_7 {dimension_numbers = #tpu.dot_dimension_numbers<[1], [0], [0], [1], [0, 0, 1, 1], [], []>} : vector<40x8xbf16>, vector<8x64xbf16>, vector<40x64xf32> -> vector<40x64xf32>
    %cst_8 = arith.constant 0.000000e+00 : f32
    %20 = vector.broadcast %cst_8 : f32 to vector<40x64xf32>
    %21 = arith.maximumf %19, %20 : vector<40x64xf32>
    %22 = arith.truncf %21 : vector<40x64xf32> to vector<40x64xbf16>
    %c0_9 = arith.constant 0 : index
    %c0_10 = arith.constant 0 : index
    %23 = vector.load %arg6[%c0_9, %c0_10] : memref<64x32xbf16, #tpu.memory_space<vmem>>, vector<64x32xbf16>
    %cst_11 = arith.constant dense<0.000000e+00> : vector<40x32xf32>
    %24 = tpu.matmul %22, %23, %cst_11 {dimension_numbers = #tpu.dot_dimension_numbers<[1], [0], [0], [1], [0, 0, 1, 1], [], []>} : vector<40x64xbf16>, vector<64x32xbf16>, vector<40x32xf32> -> vector<40x32xf32>
    %25 = arith.negf %24 : vector<40x32xf32>
    %26 = math.exp %25 : vector<40x32xf32>
    %cst_12 = arith.constant 1.000000e+00 : f32
    %27 = vector.broadcast %cst_12 : f32 to vector<40x32xf32>
    %28 = arith.addf %27, %26 : vector<40x32xf32>
    %29 = arith.divf %27, %28 : vector<40x32xf32>
    %c0_13 = arith.constant 0 : index
    %c0_14 = arith.constant 0 : index
    %30 = vector.load %arg10[%c0_13, %c0_14] : memref<8x32xf32, #tpu.memory_space<vmem>>, vector<8x32xf32>
    %31 = vector.shape_cast %29 : vector<40x32xf32> to vector<5x8x32xf32>
    %cst_15 = arith.constant dense<0.000000e+00> : vector<8x32xf32>
    %32 = vector.multi_reduction <add>, %31, %cst_15 [0] : vector<5x8x32xf32> to vector<8x32xf32>
    %33 = arith.addf %30, %32 : vector<8x32xf32>
    %c0_16 = arith.constant 0 : index
    %c0_17 = arith.constant 0 : index
    %34 = vector.load %arg10[%c0_16, %c0_17] : memref<8x32xf32, #tpu.memory_space<vmem>>, vector<8x32xf32>
    tpu.vector_store %arg10[%c0_16, %c0_17], %33 {strides = array<i32>} : memref<8x32xf32, #tpu.memory_space<vmem>>, vector<8x32xf32>,
    %c1_i32 = arith.constant 1 : i32
    %35 = arith.cmpi eq, %arg1, %c1_i32 : i32
    %36 = arith.extui %35 : i1 to i32
    %c0_i32_18 = arith.constant 0 : i32
    %37 = arith.cmpi ne, %36, %c0_i32_18 : i32
    scf.if %37 {
      %c0_19 = arith.constant 0 : index
      %c0_20 = arith.constant 0 : index
      %38 = vector.load %arg10[%c0_19, %c0_20] : memref<8x32xf32, #tpu.memory_space<vmem>>, vector<8x32xf32>
      %cst_21 = arith.constant 1.000000e-01 : f32
      %39 = vector.broadcast %cst_21 : f32 to vector<8x32xf32>
      %40 = arith.mulf %38, %39 : vector<8x32xf32>
      %c0_22 = arith.constant 0 : index
      %c0_23 = arith.constant 0 : index
      %41 = vector.load %arg9[%c0_22, %c0_23] : memref<8x16xf32, #tpu.memory_space<vmem>>, vector<8x16xf32>
      %42 = tpu.concatenate %40, %41 in 1 : vector<8x32xf32>, vector<8x16xf32> -> vector<8x48xf32>
      %c0_24 = arith.constant 0 : index
      %c0_25 = arith.constant 0 : index
      %43 = vector.load %arg8[%c0_24, %c0_25] : memref<8x48xf32, #tpu.memory_space<vmem>>, vector<8x48xf32>
      tpu.vector_store %arg8[%c0_24, %c0_25], %42 {strides = array<i32>} : memref<8x48xf32, #tpu.memory_space<vmem>>, vector<8x48xf32>,
    } else {
    }
    return
  }
  func.func @transform_0(%arg0: i32, %arg1: i32) -> (i32, i32) {
    %c0_i32 = arith.constant 0 : i32
    %c0_i32_0 = arith.constant 0 : i32
    return %arg0, %c0_i32 : i32, i32
  }
  func.func @transform_1(%arg0: i32, %arg1: i32) -> (i32, i32) {
    %c0_i32 = arith.constant 0 : i32
    %c0_i32_0 = arith.constant 0 : i32
    %c0_i32_1 = arith.constant 0 : i32
    return %c0_i32, %c0_i32_0 : i32, i32
  }
  func.func @transform_2(%arg0: i32, %arg1: i32) -> (i32, i32) {
    %c0_i32 = arith.constant 0 : i32
    %c0_i32_0 = arith.constant 0 : i32
    %c0_i32_1 = arith.constant 0 : i32
    return %c0_i32, %c0_i32_0 : i32, i32
  }
  func.func @transform_3(%arg0: i32, %arg1: i32) -> (i32, i32) {
    %c0_i32 = arith.constant 0 : i32
    %c0_i32_0 = arith.constant 0 : i32
    %c0_i32_1 = arith.constant 0 : i32
    return %c0_i32, %c0_i32_0 : i32, i32
  }
  func.func @transform_4(%arg0: i32, %arg1: i32) -> (i32, i32) {
    %c0_i32 = arith.constant 0 : i32
    %c0_i32_0 = arith.constant 0 : i32
    %c0_i32_1 = arith.constant 0 : i32
    return %c0_i32, %c0_i32_0 : i32, i32
  }
  func.func @transform_5(%arg0: i32, %arg1: i32) -> (i32, i32, i32) {
    %c0_i32 = arith.constant 0 : i32
    %c0_i32_0 = arith.constant 0 : i32
    return %arg1, %arg0, %c0_i32 : i32, i32, i32
  }
  func.func @transform_6(%arg0: i32, %arg1: i32) -> (i32, i32) {
    %c0_i32 = arith.constant 0 : i32
    %c0_i32_0 = arith.constant 0 : i32
    return %arg0, %c0_i32 : i32, i32
  }
}

</mosaic_0001>

<llo_original>
// kernel: vae_forward.1
$region0: #{vae_forward.1}
  #allocation0 [shape = 'u32[]', space=smem, size = 0x4, offset = 0x4, fixed_abs, tag = 'smem constant byte address 0x4 - core index']
  #allocation1 [shape = 'u32[144,128]{1,0:T(1,128)}', space=vmem, size = 0x12000, scoped, tag = 'internal scratch']
  #allocation2 [shape = 'f32[8,16]{1,0:T(8,128)}', space=vmem, size = 0x1000, scoped, tag = 'scratch operand']
  #allocation3 [shape = 'f32[8,32]{1,0:T(8,128)}', space=vmem, size = 0x1000, scoped, tag = 'scratch operand']
  %s0 = inlined_call_operand.vmem [shape: bf16[8,32], index: 0, kind: input, shape index: {}]
  %s1 = inlined_call_operand.vmem [shape: bf16[32,64], index: 1, kind: input, shape index: {}]
  %s2 = inlined_call_operand.vmem [shape: bf16[64,16], index: 2, kind: input, shape index: {}]
  %s3 = inlined_call_operand.vmem [shape: bf16[8,64], index: 3, kind: input, shape index: {}]
  %s4 = inlined_call_operand.vmem [shape: bf16[64,32], index: 4, kind: input, shape index: {}]
  %s5 = inlined_call_operand.vmem [shape: f32[10,8,8], index: 5, kind: input, shape index: {}]
  %s6 = inlined_call_operand.vmem [shape: f32[8,48], index: 6, kind: output, shape index: {}]
  %s7 = sld [smem:[#allocation0]]
  $region65: #{vae_forward.1} parent=0
    _
  %s9 = ssub.s32 1, %s7
  %s10 = scalar_select 0, %s9, %s7
  loop: start=0, step=1, limit=4
  $region2: #{vae_forward.1} parent=0 // loop_pre_header
    _
  $region3: #{vae_forward.1} parent=0 // loop_header
    %s12 = sphi 0, %s16
    %p13 = scmp.ge.s32.totalorder %s12, 4
    %s19 = sphi 0, %s31
    %s20 = sphi 0, %s27
    %s21 = sphi 0, %s19
    %s22 = sphi 0, %s20
    %s23 = sphi 0, %s21
    %s24 = sphi 0, %s22
    %s34 = sphi 0, %s36
    %s37 = sphi 0, %s34
    %s38 = sphi 0, %s37
    %s54 = sphi 0, %s38
    %s58 = sphi 0, %s58
    %s60 = sphi 0, %s58
    %s61 = sphi 0, %s60
    %s75 = sphi 0, %s61
    %s79 = sphi 0, %s79
    %s81 = sphi 0, %s79
    %s82 = sphi 0, %s81
    %s96 = sphi 0, %s82
    %s100 = sphi 0, %s100
    %s102 = sphi 0, %s100
    %s103 = sphi 0, %s102
    %s117 = sphi 0, %s103
    %s121 = sphi 0, %s121
    %s123 = sphi 0, %s121
    %s124 = sphi 0, %s123
    %s138 = sphi 0, %s124
    %s146 = sphi 0, %s148
    %s149 = sphi 0, %s146
    %s150 = sphi 0, %s149
    %s166 = sphi 0, %s150
    %s172 = sphi 0, %s174
    %s175 = sphi 0, %s172
    %s176 = sphi 0, %s175
    %s192 = sphi 0, %s176
  $region4: #{vae_forward.1} parent=0 // loop_header_branch
    %15 = sbr.rel (%p13) target = $region8
  $region5: #{vae_forward.1} parent=0 // loop_body
    %s17 = ssub.s32 %s12, 1
    %s18 = ssub.s32 %s12, 2
    %s25 = sadd.s32 1, %s20
    %p26 = scmp.ge.s32.totalorder %s25, 2
    %s27 = scalar_select %p26, 0, %s25
    %s28 = sadd.s32 1, %s19
    %s29 = scalar_select %p26, %s28, %s19
    %p30 = scmp.ge.s32.totalorder %s29, 1
    %s31 = scalar_select %p30, 0, %s29
    %s32 = ssub.s32 %s19, %s31
    %p33 = scmp.eq.s32.totalorder %s32, 0
    %s35 = sadd.s32 %s34, 1
    %s36 = scalar_select %p33, %s34, %s35
    %p39 = pneg %p33
    %p40 = scmp.eq.s32.totalorder %s12, 1
    %p41 = por %p39, %p40
    %p42 = scmp.ne.s32.totalorder %s34, %s37
    %p43 = scmp.eq.s32.totalorder %s12, 0
    %p44 = por %p42, %p43
    %p45 = scmp.ne.s32.totalorder %s34, %s37
    %p46 = scmp.eq.s32.totalorder %s17, 1
    %p47 = por %p45, %p46
    %p48 = scmp.ne.s32.totalorder %s37, %s38
    %p49 = scmp.eq.s32.totalorder %s17, 0
    %p50 = por %p48, %p49
    %p51 = scmp.ne.s32.totalorder %s37, %s38
    %p52 = scmp.eq.s32.totalorder %s18, 1
    %p53 = por %p51, %p52
    %p55 = scmp.ne.s32.totalorder %s38, %s54
    %p56 = scmp.eq.s32.totalorder %s18, 0
    %p57 = por %p55, %p56
    %s59 = sadd.s32 %s58, 1
    %p62 = scmp.eq.s32.totalorder %s12, 1
    %p63 = scmp.ne.s32.totalorder %s58, %s60
    %p64 = scmp.eq.s32.totalorder %s12, 0
    %p65 = por %p63, %p64
    %p66 = scmp.ne.s32.totalorder %s58, %s60
    %p67 = scmp.eq.s32.totalorder %s17, 1
    %p68 = por %p66, %p67
    %p69 = scmp.ne.s32.totalorder %s60, %s61
    %p70 = scmp.eq.s32.totalorder %s17, 0
    %p71 = por %p69, %p70
    %p72 = scmp.ne.s32.totalorder %s60, %s61
    %p73 = scmp.eq.s32.totalorder %s18, 1
    %p74 = por %p72, %p73
    %p76 = scmp.ne.s32.totalorder %s61, %s75
    %p77 = scmp.eq.s32.totalorder %s18, 0
    %p78 = por %p76, %p77
    %s80 = sadd.s32 %s79, 1
    %p83 = scmp.eq.s32.totalorder %s12, 1
    %p84 = scmp.ne.s32.totalorder %s79, %s81
    %p85 = scmp.eq.s32.totalorder %s12, 0
    %p86 = por %p84, %p85
    %p87 = scmp.ne.s32.totalorder %s79, %s81
    %p88 = scmp.eq.s32.totalorder %s17, 1
    %p89 = por %p87, %p88
    %p90 = scmp.ne.s32.totalorder %s81, %s82
    %p91 = scmp.eq.s32.totalorder %s17, 0
    %p92 = por %p90, %p91
    %p93 = scmp.ne.s32.totalorder %s81, %s82
    %p94 = scmp.eq.s32.totalorder %s18, 1
    %p95 = por %p93, %p94
    %p97 = scmp.ne.s32.totalorder %s82, %s96
    %p98 = scmp.eq.s32.totalorder %s18, 0
    %p99 = por %p97, %p98
    %s101 = sadd.s32 %s100, 1
    %p104 = scmp.eq.s32.totalorder %s12, 1
    %p105 = scmp.ne.s32.totalorder %s100, %s102
    %p106 = scmp.eq.s32.totalorder %s12, 0
    %p107 = por %p105, %p106
    %p108 = scmp.ne.s32.totalorder %s100, %s102
    %p109 = scmp.eq.s32.totalorder %s17, 1
    %p110 = por %p108, %p109
    %p111 = scmp.ne.s32.totalorder %s102, %s103
    %p112 = scmp.eq.s32.totalorder %s17, 0
    %p113 = por %p111, %p112
    %p114 = scmp.ne.s32.totalorder %s102, %s103
    %p115 = scmp.eq.s32.totalorder %s18, 1
    %p116 = por %p114, %p115
    %p118 = scmp.ne.s32.totalorder %s103, %s117
    %p119 = scmp.eq.s32.totalorder %s18, 0
    %p120 = por %p118, %p119
    %s122 = sadd.s32 %s121, 1
    %p125 = scmp.eq.s32.totalorder %s12, 1
    %p126 = scmp.ne.s32.totalorder %s121, %s123
    %p127 = scmp.eq.s32.totalorder %s12, 0
    %p128 = por %p126, %p127
    %p129 = scmp.ne.s32.totalorder %s121, %s123
    %p130 = scmp.eq.s32.totalorder %s17, 1
    %p131 = por %p129, %p130
    %p132 = scmp.ne.s32.totalorder %s123, %s124
    %p133 = scmp.eq.s32.totalorder %s17, 0
    %p134 = por %p132, %p133
    %p135 = scmp.ne.s32.totalorder %s123, %s124
    %p136 = scmp.eq.s32.totalorder %s18, 1
    %p137 = por %p135, %p136
    %p139 = scmp.ne.s32.totalorder %s124, %s138
    %p140 = scmp.eq.s32.totalorder %s18, 0
    %p141 = por %p139, %p140
    %s142 = ssub.s32 %s20, %s27
    %s143 = ssub.s32 %s19, %s31
    %s144 = sor.u32 %s142, %s143
    %p145 = scmp.eq.s32.totalorder %s144, 0
    %s147 = sadd.s32 %s146, 1
    %s148 = scalar_select %p145, %s146, %s147
    %p151 = pneg %p145
    %p152 = scmp.eq.s32.totalorder %s12, 1
    %p153 = por %p151, %p152
    %p154 = scmp.ne.s32.totalorder %s146, %s149
    %p155 = scmp.eq.s32.totalorder %s12, 0
    %p156 = por %p154, %p155
    %p157 = scmp.ne.s32.totalorder %s146, %s149
    %p158 = scmp.eq.s32.totalorder %s17, 1
    %p159 = por %p157, %p158
    %p160 = scmp.ne.s32.totalorder %s149, %s150
    %p161 = scmp.eq.s32.totalorder %s17, 0
    %p162 = por %p160, %p161
    %p163 = scmp.ne.s32.totalorder %s149, %s150
    %p164 = scmp.eq.s32.totalorder %s18, 1
    %p165 = por %p163, %p164
    %p167 = scmp.ne.s32.totalorder %s150, %s166
    %p168 = scmp.eq.s32.totalorder %s18, 0
    %p169 = por %p167, %p168
    %s170 = ssub.s32 %s19, %s31
    %p171 = scmp.eq.s32.totalorder %s170, 0
    %s173 = sadd.s32 %s172, 1
    %s174 = scalar_select %p171, %s172, %s173
    %p177 = pneg %p171
    %p178 = scmp.eq.s32.totalorder %s12, 1
    %p179 = por %p177, %p178
    %p180 = scmp.ne.s32.totalorder %s172, %s175
    %p181 = scmp.eq.s32.totalorder %s12, 0
    %p182 = por %p180, %p181
    %p183 = scmp.ne.s32.totalorder %s172, %s175
    %p184 = scmp.eq.s32.totalorder %s17, 1
    %p185 = por %p183, %p184
    %p186 = scmp.ne.s32.totalorder %s175, %s176
    %p187 = scmp.eq.s32.totalorder %s17, 0
    %p188 = por %p186, %p187
    %p189 = scmp.ne.s32.totalorder %s175, %s176
    %p190 = scmp.eq.s32.totalorder %s18, 1
    %p191 = por %p189, %p190
    %p193 = scmp.ne.s32.totalorder %s176, %s192
    %p194 = scmp.eq.s32.totalorder %s18, 0
    %p195 = por %p193, %p194
    %p196 = scmp.le.s32.totalorder 1, %s12
    %p197 = scmp.lt.s32.totalorder %s12, 3
    %p198 = pnand %p196, %p197
    %p199 = pneg %p198
    // Predicated region
    $region9: #{vae_forward.1} parent=5 // pred_check
      _
    $region10: #{vae_forward.1} parent=5 // pred_check_branch
      %201 = sbr.rel (%p198) target = $region12
    $region11: #{vae_forward.1} parent=5 // pred_region
      %s202 = ssub.s32 %s12, 1
      // Predicated region
      $region13: #{vae_forward.1} parent=11 // pred_check
        %p203 = pneg %p50
      $region14: #{vae_forward.1} parent=11 // pred_check_branch
        %205 = sbr.rel (%p203) target = $region16
      $region15: #{vae_forward.1} parent=11 // pred_region
        %p206 = scmp.lt.s32.totalorder %s21, 0
        %s207 = scalar_select %p206, %s21, 0
        %s208 = smul.addr %s207, 4
        %s209 = scalar_lea.vmem %s0, %s208
      $region16: #{vae_forward.1} parent=11 // pred_fallthru
        _
      // Predicated region
      $region17: #{vae_forward.1} parent=11 // pred_check
        %p210 = pneg %p71
      $region18: #{vae_forward.1} parent=11 // pred_check_branch
        %212 = sbr.rel (%p210) target = $region20
      $region19: #{vae_forward.1} parent=11 // pred_region
        _
      $region20: #{vae_forward.1} parent=11 // pred_fallthru
        _
      // Predicated region
      $region21: #{vae_forward.1} parent=11 // pred_check
        %p213 = pneg %p92
      $region22: #{vae_forward.1} parent=11 // pred_check_branch
        %215 = sbr.rel (%p213) target = $region24
      $region23: #{vae_forward.1} parent=11 // pred_region
        _
      $region24: #{vae_forward.1} parent=11 // pred_fallthru
        _
      // Predicated region
      $region25: #{vae_forward.1} parent=11 // pred_check
        %p216 = pneg %p113
      $region26: #{vae_forward.1} parent=11 // pred_check_branch
        %218 = sbr.rel (%p216) target = $region28
      $region27: #{vae_forward.1} parent=11 // pred_region
        _
      $region28: #{vae_forward.1} parent=11 // pred_fallthru
        _
      // Predicated region
      $region29: #{vae_forward.1} parent=11 // pred_check
        %p219 = pneg %p134
      $region30: #{vae_forward.1} parent=11 // pred_check_branch
        %221 = sbr.rel (%p219) target = $region32
      $region31: #{vae_forward.1} parent=11 // pred_region
        _
      $region32: #{vae_forward.1} parent=11 // pred_fallthru
        _
    $region12: #{vae_forward.1} parent=5 // pred_fallthru
      _
    %p222 = scmp.lt.s32.totalorder %s12, 2
    // Predicated region
    $region33: #{vae_forward.1} parent=5 // pred_check
      %p223 = pneg %p222
    $region34: #{vae_forward.1} parent=5 // pred_check_branch
      %225 = sbr.rel (%p223) target = $region36
    $region35: #{vae_forward.1} parent=5 // pred_region
      // Predicated region
      $region37: #{vae_forward.1} parent=35 // pred_check
        %p226 = pneg %p156
      $region38: #{vae_forward.1} parent=35 // pred_check_branch
        %228 = sbr.rel (%p226) target = $region40
      $region39: #{vae_forward.1} parent=35 // pred_region
        %s229 = smul.u32 5, %s20
        %p230 = scmp.lt.s32.totalorder %s229, 9
        %s231 = scalar_select %p230, %s229, 9
        %p232 = scmp.lt.s32.totalorder %s19, 0
        %s233 = scalar_select %p232, %s19, 0
        %s234 = sadd.s32 %s233, %s231
        %s235 = smul.addr %s234, 8
        %s236 = scalar_lea.vmem %s5, %s235
        %s237 = smul.u32 5, %s20
      $region40: #{vae_forward.1} parent=35 // pred_fallthru
        _
    $region36: #{vae_forward.1} parent=5 // pred_fallthru
      _
    %p238 = scmp.le.s32.totalorder 1, %s12
    %p239 = scmp.lt.s32.totalorder %s12, 3
    %p240 = pnand %p238, %p239
    %p241 = pneg %p240
    // Predicated region
    $region41: #{vae_forward.1} parent=5 // pred_check
      _
    $region42: #{vae_forward.1} parent=5 // pred_check_branch
      %243 = sbr.rel (%p240) target = $region44
    $region43: #{vae_forward.1} parent=5 // pred_region
      %s244 = ssub.s32 %s12, 1
      %p245 = scmp.lt.s32.totalorder %s21, 0
      %s246 = scalar_select %p245, %s21, 0
      %s247 = smul.addr %s246, 4
      %s248 = scalar_lea.vmem %s0, %s247
      %p249 = pneg %p50
      %p250 = pneg %p47
      %p251 = pneg %p71
      %p252 = pneg %p68
      %p253 = pneg %p92
      %p254 = pneg %p89
      %p255 = pneg %p113
      %p256 = pneg %p110
      %p257 = pneg %p134
      %p258 = pneg %p131
      %s259 = smul.u32 5, %s22
      %p260 = scmp.lt.s32.totalorder %s259, 9
      %s261 = scalar_select %p260, %s259, 9
      %p262 = scmp.lt.s32.totalorder %s21, 0
      %s263 = scalar_select %p262, %s21, 0
      %s264 = sadd.s32 %s263, %s261
      %s265 = smul.addr %s264, 8
      %s266 = scalar_lea.vmem %s5, %s265
      %p267 = pneg %p162
      %p268 = pneg %p159
      %p269 = pneg %p188
      %p270 = pneg %p185
      %p271 = scmp.lt.s32.totalorder %s21, 0
      %s272 = scalar_select %p271, %s21, 0
      %s273 = smul.addr %s272, 8
      %s274 = scalar_lea.vmem %s6, %s273
      %p275 = scmp.lt.s32.totalorder %s21, 0
      %s276 = scalar_select %p275, %s21, 0
      %s277 = smul.addr %s276, 4
      %s278 = scalar_lea.vmem %s0, %s277
      %s279 = smul.u32 5, %s22
      %p280 = scmp.lt.s32.totalorder %s279, 9
      %s281 = scalar_select %p280, %s279, 9
      %p282 = scmp.lt.s32.totalorder %s21, 0
      %s283 = scalar_select %p282, %s21, 0
      %s284 = sadd.s32 %s283, %s281
      %s285 = smul.addr %s284, 8
      %s286 = scalar_lea.vmem %s5, %s285
      %s287 = smul.u32 5, %s22
      %p288 = scmp.lt.s32.totalorder %s21, 0
      %s289 = scalar_select %p288, %s21, 0
      %s290 = smul.addr %s289, 8
      %s291 = scalar_lea.vmem %s6, %s290
      %p293 = scmp.eq.s32.totalorder %s22, 0
      // Predicated region
      $region45: #{vae_forward.1} parent=43 // pred_check
        %p294 = pneg %p293
      $region46: #{vae_forward.1} parent=43 // pred_check_branch
        %296 = sbr.rel (%p294) target = $region48
      $region47: #{vae_forward.1} parent=43 // pred_region
        %v297 = vld [vmem:[%s278] sm:$0xf]
        %v298 = vld [vmem:[%s1] sm:$0xf]
        %v299 = vld [vmem:[%s1 + $0x4] sm:$0xf]
        %v300 = vld [vmem:[%s1 + $0x8] sm:$0xf]
        %v301 = vld [vmem:[%s1 + $0xc] sm:$0xf]
        %v306 = vunpack.c.l.b16 %v298
        %v307 = vunpack.c.l.b16 %v299
        %v308 = vunpack.c.l.b16 %v300
        %v309 = vunpack.c.l.b16 %v301
        %v310 = vpack.c.b16 %v307, %v306
        %v311 = vpack.c.b16 %v309, %v308
        %vm314 = vcmask 261120
        %v316 = vsel %vm314, %v297, 0
        %318 = vmatprep.subr.bf16.mxu0 0
        %319 = vmatpush1.bf16.msra.mxu0 %v310
        %320 = vmatprep.subr.bf16.mxu0 0
        %321 = vmatpush1.bf16.msra.mxu0 %v311
        %322 = vmatprep.subr.bf16.mxu0 0
        %323 = vmatpush1.bf16.msra.mxu0 0
        %324 = vmatprep.subr.bf16.mxu0 0
        %325 = vmatpush1.bf16.msra.mxu0 0
        %326 = vmatprep.subr.bf16.mxu0 0
        %327 = vmatpush1.bf16.msra.mxu0 0
        %328 = vmatprep.subr.bf16.mxu0 0
        %329 = vmatpush1.bf16.msra.mxu0 0
        %330 = vmatprep.subr.bf16.mxu0 0
        %331 = vmatpush1.bf16.msra.mxu0 0
        %332 = vmatprep.subr.bf16.mxu0 0
        %333 = vmatpush1.bf16.msra.mxu0 0
        %334 = vmatprep.subr.bf16.mxu0 0
        %335 = vmatpush1.bf16.msra.mxu0 0
        %336 = vmatprep.subr.bf16.mxu0 0
        %337 = vmatpush1.bf16.msra.mxu0 0
        %338 = vmatprep.subr.bf16.mxu0 0
        %339 = vmatpush1.bf16.msra.mxu0 0
        %340 = vmatprep.subr.bf16.mxu0 0
        %341 = vmatpush1.bf16.msra.mxu0 0
        %342 = vmatprep.subr.bf16.mxu0 0
        %343 = vmatpush1.bf16.msra.mxu0 0
        %344 = vmatprep.subr.bf16.mxu0 0
        %345 = vmatpush1.bf16.msra.mxu0 0
        %346 = vmatprep.subr.bf16.mxu0 0
        %347 = vmatpush1.bf16.msra.mxu0 0
        %348 = vmatprep.subr.bf16.mxu0 0
        %349 = vmatpush1.bf16.msra.mxu0 0
        %350 = vmatprep.mubr.bf16.mxu0 0
        %351 = vmatmul.mubr.bf16.gmra.mrb[0].mxu0 %v316
        %v352 = vpop.f32.mrb[0].mxu0
        %v353 = vadd.f32 0.0, %v352
        %v354 = vpop.f32.mrb[0].mxu0
        %v355 = vpop.f32.mrb[0].mxu0
        %v356 = vpop.f32.mrb[0].mxu0
        %357 = vdwg.mxu0
        %v358 = vmax.f32 %v353, 0.0
        %v359 = vpack.c.bf16 %v358, %v358
        %v360 = vld [vmem:[%s2] sm:$0xf]
        %v361 = vld [vmem:[%s2 + $0x4] sm:$0xf]
        %v362 = vld [vmem:[%s2 + $0x8] sm:$0xf]
        %v363 = vld [vmem:[%s2 + $0xc] sm:$0xf]
        %v364 = vld [vmem:[%s2 + $0x10] sm:$0xf]
        %v365 = vld [vmem:[%s2 + $0x14] sm:$0xf]
        %v366 = vld [vmem:[%s2 + $0x18] sm:$0xf]
        %v367 = vld [vmem:[%s2 + $0x1c] sm:$0xf]
        %v376 = vunpack.c.l.b16 %v360
        %v377 = vunpack.c.l.b16 %v361
        %v378 = vunpack.c.l.b16 %v362
        %v379 = vunpack.c.l.b16 %v363
        %v380 = vunpack.c.l.b16 %v364
        %v381 = vunpack.c.l.b16 %v365
        %v382 = vunpack.c.l.b16 %v366
        %v383 = vunpack.c.l.b16 %v367
        %v384 = vpack.c.b16 %v377, %v376
        %v385 = vpack.c.b16 %v379, %v378
        %v386 = vpack.c.b16 %v381, %v380
        %v387 = vpack.c.b16 %v383, %v382
        %vm392 = vcmask 523264
        %v394 = vsel %vm392, %v359, 0
        %396 = vmatprep.subr.bf16.mxu0 0
        %397 = vmatpush1.bf16.msra.mxu0 %v384
        %398 = vmatprep.subr.bf16.mxu0 0
        %399 = vmatpush1.bf16.msra.mxu0 %v385
        %400 = vmatprep.subr.bf16.mxu0 0
        %401 = vmatpush1.bf16.msra.mxu0 %v386
        %402 = vmatprep.subr.bf16.mxu0 0
        %403 = vmatpush1.bf16.msra.mxu0 %v387
        %404 = vmatprep.subr.bf16.mxu0 0
        %405 = vmatpush1.bf16.msra.mxu0 0
        %406 = vmatprep.subr.bf16.mxu0 0
        %407 = vmatpush1.bf16.msra.mxu0 0
        %408 = vmatprep.subr.bf16.mxu0 0
        %409 = vmatpush1.bf16.msra.mxu0 0
        %410 = vmatprep.subr.bf16.mxu0 0
        %411 = vmatpush1.bf16.msra.mxu0 0
        %412 = vmatprep.subr.bf16.mxu0 0
        %413 = vmatpush1.bf16.msra.mxu0 0
        %414 = vmatprep.subr.bf16.mxu0 0
        %415 = vmatpush1.bf16.msra.mxu0 0
        %416 = vmatprep.subr.bf16.mxu0 0
        %417 = vmatpush1.bf16.msra.mxu0 0
        %418 = vmatprep.subr.bf16.mxu0 0
        %419 = vmatpush1.bf16.msra.mxu0 0
        %420 = vmatprep.subr.bf16.mxu0 0
        %421 = vmatpush1.bf16.msra.mxu0 0
        %422 = vmatprep.subr.bf16.mxu0 0
        %423 = vmatpush1.bf16.msra.mxu0 0
        %424 = vmatprep.subr.bf16.mxu0 0
        %425 = vmatpush1.bf16.msra.mxu0 0
        %426 = vmatprep.subr.bf16.mxu0 0
        %427 = vmatpush1.bf16.msra.mxu0 0
        %428 = vmatprep.mubr.bf16.mxu0 0
        %429 = vmatmul.mubr.bf16.gmra.mrb[0].mxu0 %v394
        %v430 = vpop.f32.mrb[0].mxu0
        %v431 = vadd.f32 0.0, %v430
        %v432 = vpop.f32.mrb[0].mxu0
        %v433 = vpop.f32.mrb[0].mxu0
        %v434 = vpop.f32.mrb[0].mxu0
        %435 = vdwg.mxu0
        %vm436 = vcmask 130048
        %437 = vst.msk [vmem:[#allocation2] sm:$0xff] %vm436, %v431
        %438 = vst.msk [vmem:[#allocation3] sm:$0xff] %vm314, 0.0
      $region48: #{vae_forward.1} parent=43 // pred_fallthru
        _
      %v439 = vld [vmem:[#allocation2] sm:$0xff]
      %v440 = vmul.f32 %v439, 0.5
      %v441 = vmul.f32 %v440, 1.442695
      %v442 = vpow.pop %v441
      %v443 = vld [vmem:[%s286] sm:$0xff]
      %v444 = vld [vmem:[%s286 + $0x8] sm:$0xff]
      %v445 = vld [vmem:[%s286 + $0x10] sm:$0xff]
      %v446 = vld [vmem:[%s286 + $0x18] sm:$0xff]
      %v447 = vld [vmem:[%s286 + $0x20] sm:$0xff]
      %449 = vrot.lane.b32.xlu0 %v442, 120
      %v450 = vpop.permute.xlu0 %449
      %v452 = vmul.f32 %v443, %v450
      %v453 = vmul.f32 %v444, %v450
      %v454 = vmul.f32 %v445, %v450
      %v455 = vmul.f32 %v446, %v450
      %v456 = vmul.f32 %v447, %v450
      %v457 = vadd.f32 %v452, %v439
      %v458 = vadd.f32 %v453, %v439
      %v459 = vadd.f32 %v454, %v439
      %v460 = vadd.f32 %v455, %v439
      %v461 = vadd.f32 %v456, %v439
      %v462 = vpack.c.bf16 %v458, %v457
      %v463 = vpack.c.bf16 %v460, %v459
      %v464 = vpack.c.bf16 %v461, %v461
      %v465 = vld [vmem:[%s3] sm:$0xf]
      %vm466 = vcmask 64512
      %v468 = vsel %vm466, %v462, 0
      %v471 = vsel %vm466, %v463, 0
      %v474 = vsel %vm466, %v464, 0
      %vm476 = vcmask 1043456
      %v478 = vsel %vm476, %v465, 0
      %480 = vmatprep.subr.bf16.mxu0 0
      %481 = vmatpush1.bf16.msra.mxu0 %v478
      %482 = vmatprep.subr.bf16.mxu0 0
      %483 = vmatpush1.bf16.msra.mxu0 0
      %484 = vmatprep.subr.bf16.mxu0 0
      %485 = vmatpush1.bf16.msra.mxu0 0
      %486 = vmatprep.subr.bf16.mxu0 0
      %487 = vmatpush1.bf16.msra.mxu0 0
      %488 = vmatprep.subr.bf16.mxu0 0
      %489 = vmatpush1.bf16.msra.mxu0 0
      %490 = vmatprep.subr.bf16.mxu0 0
      %491 = vmatpush1.bf16.msra.mxu0 0
      %492 = vmatprep.subr.bf16.mxu0 0
      %493 = vmatpush1.bf16.msra.mxu0 0
      %494 = vmatprep.subr.bf16.mxu0 0
      %495 = vmatpush1.bf16.msra.mxu0 0
      %496 = vmatprep.subr.bf16.mxu0 0
      %497 = vmatpush1.bf16.msra.mxu0 0
      %498 = vmatprep.subr.bf16.mxu0 0
      %499 = vmatpush1.bf16.msra.mxu0 0
      %500 = vmatprep.subr.bf16.mxu0 0
      %501 = vmatpush1.bf16.msra.mxu0 0
      %502 = vmatprep.subr.bf16.mxu0 0
      %503 = vmatpush1.bf16.msra.mxu0 0
      %504 = vmatprep.subr.bf16.mxu0 0
      %505 = vmatpush1.bf16.msra.mxu0 0
      %506 = vmatprep.subr.bf16.mxu0 0
      %507 = vmatpush1.bf16.msra.mxu0 0
      %508 = vmatprep.subr.bf16.mxu0 0
      %509 = vmatpush1.bf16.msra.mxu0 0
      %510 = vmatprep.subr.bf16.mxu0 0
      %511 = vmatpush1.bf16.msra.mxu0 0
      %512 = vmatprep.mubr.bf16.mxu0 0
      %513 = vmatmul.mubr.bf16.gmra.mrb[0].mxu0 %v468
      %v514 = vpop.f32.mrb[0].mxu0
      %v515 = vadd.f32 0.0, %v514
      %v516 = vpop.f32.mrb[0].mxu0
      %v517 = vpop.f32.mrb[0].mxu0
      %v518 = vadd.f32 0.0, %v517
      %v519 = vpop.f32.mrb[0].mxu0
      %520 = vmatprep.mubr.bf16.mxu0 0
      %521 = vmatmul.mubr.bf16.gmra.mrb[0].mxu0 %v471
      %v522 = vpop.f32.mrb[0].mxu0
      %v523 = vadd.f32 0.0, %v522
      %v524 = vpop.f32.mrb[0].mxu0
      %v525 = vpop.f32.mrb[0].mxu0
      %v526 = vadd.f32 0.0, %v525
      %v527 = vpop.f32.mrb[0].mxu0
      %528 = vmatprep.mubr.bf16.mxu0 0
      %529 = vmatmul.mubr.bf16.gmra.mrb[0].mxu0 %v474
      %v530 = vpop.f32.mrb[0].mxu0
      %v531 = vadd.f32 0.0, %v530
      %v532 = vpop.f32.mrb[0].mxu0
      %v533 = vpop.f32.mrb[0].mxu0
      %v534 = vpop.f32.mrb[0].mxu0
      %535 = vdwg.mxu0
      %v536 = vmax.f32 %v515, 0.0
      %v537 = vmax.f32 %v518, 0.0
      %v538 = vmax.f32 %v523, 0.0
      %v539 = vmax.f32 %v526, 0.0
      %v540 = vmax.f32 %v531, 0.0
      %v541 = vpack.c.bf16 %v537, %v536
      %v542 = vpack.c.bf16 %v539, %v538
      %v543 = vpack.c.bf16 %v540, %v540
      %v544 = vld [vmem:[%s4] sm:$0xf]
      %v545 = vld [vmem:[%s4 + $0x4] sm:$0xf]
      %v546 = vld [vmem:[%s4 + $0x8] sm:$0xf]
      %v547 = vld [vmem:[%s4 + $0xc] sm:$0xf]
      %v548 = vld [vmem:[%s4 + $0x10] sm:$0xf]
      %v549 = vld [vmem:[%s4 + $0x14] sm:$0xf]
      %v550 = vld [vmem:[%s4 + $0x18] sm:$0xf]
      %v551 = vld [vmem:[%s4 + $0x1c] sm:$0xf]
      %v560 = vunpack.c.l.b16 %v544
      %v561 = vunpack.c.l.b16 %v545
      %v562 = vunpack.c.l.b16 %v546
      %v563 = vunpack.c.l.b16 %v547
      %v564 = vunpack.c.l.b16 %v548
      %v565 = vunpack.c.l.b16 %v549
      %v566 = vunpack.c.l.b16 %v550
      %v567 = vunpack.c.l.b16 %v551
      %v568 = vpack.c.b16 %v561, %v560
      %v569 = vpack.c.b16 %v563, %v562
      %v570 = vpack.c.b16 %v565, %v564
      %v571 = vpack.c.b16 %v567, %v566
      %vm576 = vcmask 523264
      %v578 = vsel %vm576, %v541, 0
      %v581 = vsel %vm576, %v542, 0
      %v584 = vsel %vm576, %v543, 0
      %586 = vmatprep.subr.bf16.mxu0 0
      %587 = vmatpush1.bf16.msra.mxu0 %v568
      %588 = vmatprep.subr.bf16.mxu0 0
      %589 = vmatpush1.bf16.msra.mxu0 %v569
      %590 = vmatprep.subr.bf16.mxu0 0
      %591 = vmatpush1.bf16.msra.mxu0 %v570
      %592 = vmatprep.subr.bf16.mxu0 0
      %593 = vmatpush1.bf16.msra.mxu0 %v571
      %594 = vmatprep.subr.bf16.mxu0 0
      %595 = vmatpush1.bf16.msra.mxu0 0
      %596 = vmatprep.subr.bf16.mxu0 0
      %597 = vmatpush1.bf16.msra.mxu0 0
      %598 = vmatprep.subr.bf16.mxu0 0
      %599 = vmatpush1.bf16.msra.mxu0 0
      %600 = vmatprep.subr.bf16.mxu0 0
      %601 = vmatpush1.bf16.msra.mxu0 0
      %602 = vmatprep.subr.bf16.mxu0 0
      %603 = vmatpush1.bf16.msra.mxu0 0
      %604 = vmatprep.subr.bf16.mxu0 0
      %605 = vmatpush1.bf16.msra.mxu0 0
      %606 = vmatprep.subr.bf16.mxu0 0
      %607 = vmatpush1.bf16.msra.mxu0 0
      %608 = vmatprep.subr.bf16.mxu0 0
      %609 = vmatpush1.bf16.msra.mxu0 0
      %610 = vmatprep.subr.bf16.mxu0 0
      %611 = vmatpush1.bf16.msra.mxu0 0
      %612 = vmatprep.subr.bf16.mxu0 0
      %613 = vmatpush1.bf16.msra.mxu0 0
      %614 = vmatprep.subr.bf16.mxu0 0
      %615 = vmatpush1.bf16.msra.mxu0 0
      %616 = vmatprep.subr.bf16.mxu0 0
      %617 = vmatpush1.bf16.msra.mxu0 0
      %618 = vmatprep.mubr.bf16.mxu0 0
      %619 = vmatmul.mubr.bf16.gmra.mrb[0].mxu0 %v578
      %v620 = vpop.f32.mrb[0].mxu0
      %v621 = vadd.f32 0.0, %v620
      %v622 = vpop.f32.mrb[0].mxu0
      %v623 = vpop.f32.mrb[0].mxu0
      %v624 = vadd.f32 0.0, %v623
      %v625 = vpop.f32.mrb[0].mxu0
      %626 = vmatprep.mubr.bf16.mxu0 0
      %627 = vmatmul.mubr.bf16.gmra.mrb[0].mxu0 %v581
      %v628 = vpop.f32.mrb[0].mxu0
      %v629 = vadd.f32 0.0, %v628
      %v630 = vpop.f32.mrb[0].mxu0
      %v631 = vpop.f32.mrb[0].mxu0
      %v632 = vadd.f32 0.0, %v631
      %v633 = vpop.f32.mrb[0].mxu0
      %634 = vmatprep.mubr.bf16.mxu0 0
      %635 = vmatmul.mubr.bf16.gmra.mrb[0].mxu0 %v584
      %v636 = vpop.f32.mrb[0].mxu0
      %v637 = vadd.f32 0.0, %v636
      %v638 = vpop.f32.mrb[0].mxu0
      %v639 = vpop.f32.mrb[0].mxu0
      %v640 = vpop.f32.mrb[0].mxu0
      %641 = vdwg.mxu0
      %v642 = vxor.u32 %v621, 2147483648
      %v643 = vxor.u32 %v624, 2147483648
      %v644 = vxor.u32 %v629, 2147483648
      %v645 = vxor.u32 %v632, 2147483648
      %v646 = vxor.u32 %v637, 2147483648
      %v647 = vmul.f32 %v642, 1.442695
      %v648 = vpow.pop %v647
      %v649 = vmul.f32 %v643, 1.442695
      %v650 = vpow.pop %v649
      %v651 = vmul.f32 %v644, 1.442695
      %v652 = vpow.pop %v651
      %v653 = vmul.f32 %v645, 1.442695
      %v654 = vpow.pop %v653
      %v655 = vmul.f32 %v646, 1.442695
      %v656 = vpow.pop %v655
      %v657 = vadd.f32 %v648, 1.0
      %v658 = vadd.f32 %v650, 1.0
      %v659 = vadd.f32 %v652, 1.0
      %v660 = vadd.f32 %v654, 1.0
      %v661 = vadd.f32 %v656, 1.0
      %v662 = vrcp.pop %v657
      %v663 = vmul.f32 1.0, %v662
      %v664 = vrcp.pop %v658
      %v665 = vmul.f32 1.0, %v664
      %v666 = vrcp.pop %v659
      %v667 = vmul.f32 1.0, %v666
      %v668 = vrcp.pop %v660
      %v669 = vmul.f32 1.0, %v668
      %v670 = vrcp.pop %v661
      %v671 = vmul.f32 1.0, %v670
      %v672 = vld [vmem:[#allocation3] sm:$0xff]
      %vm673 = vcmask 261120
      %v674 = vsel %vm673, %v663, 0.0
      %v675 = vsel %vm673, %v665, 0.0
      %v676 = vadd.f32 %v674, %v675
      %v677 = vsel %vm673, %v667, 0.0
      %v678 = vadd.f32 %v676, %v677
      %v679 = vsel %vm673, %v669, 0.0
      %v680 = vadd.f32 %v678, %v679
      %v681 = vsel %vm673, %v671, 0.0
      %v682 = vadd.f32 %v680, %v681
      %v683 = vadd.f32 %v672, %v682
      %684 = vst.msk [vmem:[#allocation3] sm:$0xff] %vm673, %v683
      %p685 = scmp.eq.s32.totalorder %s22, 1
      // Predicated region
      $region49: #{vae_forward.1} parent=43 // pred_check
        %p686 = pneg %p685
      $region50: #{vae_forward.1} parent=43 // pred_check_branch
        %688 = sbr.rel (%p686) target = $region52
      $region51: #{vae_forward.1} parent=43 // pred_region
        %v689 = vld [vmem:[#allocation3] sm:$0xff]
        %v690 = vmul.f32 %v689, 0.1
        %v691 = vld [vmem:[#allocation2] sm:$0xff]
        %693 = vrot.lane.b32.xlu0 %v691, 32
        %v694 = vpop.permute.xlu0 %693
        %v696 = vsel %vm673, %v690, %v694
        %vm697 = vcmask 392192
        %698 = vst.msk [vmem:[%s291] sm:$0xff] %vm697, %v696
      $region52: #{vae_forward.1} parent=43 // pred_fallthru
        _
      %p699 = scmp.lt.s32.totalorder %s21, 0
      %s700 = scalar_select %p699, %s21, 0
      %s701 = smul.addr %s700, 8
      %s702 = scalar_lea.vmem %s6, %s701
      // Predicated region
      $region53: #{vae_forward.1} parent=43 // pred_check
        %p703 = pneg %p185
      $region54: #{vae_forward.1} parent=43 // pred_check_branch
        %705 = sbr.rel (%p703) target = $region56
      $region55: #{vae_forward.1} parent=43 // pred_region
        _
      $region56: #{vae_forward.1} parent=43 // pred_fallthru
        _
      // Predicated region
      $region57: #{vae_forward.1} parent=43 // pred_check
        %p706 = pneg %p185
      $region58: #{vae_forward.1} parent=43 // pred_check_branch
        %708 = sbr.rel (%p706) target = $region60
      $region59: #{vae_forward.1} parent=43 // pred_region
        %p709 = scmp.lt.s32.totalorder %s21, 0
        %s710 = scalar_select %p709, %s21, 0
        %s711 = smul.addr %s710, 8
        %s712 = scalar_lea.vmem %s6, %s711
      $region60: #{vae_forward.1} parent=43 // pred_fallthru
        _
    $region44: #{vae_forward.1} parent=5 // pred_fallthru
      _
    %p713 = scmp.le.s32.totalorder 2, %s12
    // Predicated region
    $region61: #{vae_forward.1} parent=5 // pred_check
      %p714 = pneg %p713
    $region62: #{vae_forward.1} parent=5 // pred_check_branch
      %716 = sbr.rel (%p714) target = $region64
    $region63: #{vae_forward.1} parent=5 // pred_region
      %s717 = ssub.s32 %s12, 2
    $region64: #{vae_forward.1} parent=5 // pred_fallthru
      _
  $region6: #{vae_forward.1} parent=0 // loop_footer
    %s16 = sadd.s32 1, %s12
  $region7: #{vae_forward.1} parent=0 // loop_footer_branch
    %11 = sbr.rel target = $region3
  $region8: #{vae_forward.1} parent=0 // loop_exit
    _

</llo_original>
